<compile_context>
chip_gen: v5e
topology: v5e:2x2
jax: 0.10.0
libtpu: 0.0.40
codegen_flags: <defaults>
</compile_context>

<pallas_src>
import functools
import math

import numpy as np
import jax
import jax.numpy as jnp
from jax.experimental import pallas as pl
from jax.experimental.pallas import tpu as pltpu


# ----------------------------- host-side helpers -----------------------------

def _round_up(v: int, m: int) -> int:
    return -(-v // m) * m


def _sublane(itemsize: int) -> int:
    return {4: 8, 2: 16, 1: 32}.get(itemsize, 8)


def _interp_matrix_np(out_size: int, in_size: int) -> np.ndarray:
    """Bilinear interpolation matrix matching PyTorch align_corners=False."""
    scale = in_size / out_size
    i = np.arange(out_size, dtype=np.float64)
    src = scale * (i + 0.5) - 0.5
    src = np.maximum(src, 0.0)                      # PyTorch clamps negative coords
    i0 = np.minimum(np.floor(src).astype(np.int64), in_size - 1)
    frac = src - i0
    i1 = np.minimum(i0 + 1, in_size - 1)
    m = np.zeros((out_size, in_size), dtype=np.float64)
    rows = np.arange(out_size)
    np.add.at(m, (rows, i0), 1.0 - frac)            # handles i0 == i1 correctly
    np.add.at(m, (rows, i1), frac)
    return m.astype(np.float32)                     # (out_size, in_size), f32 taps


def _vmem_capacity_bytes() -> int:
    """Per-core VMEM capacity; conservative v7x fallback if the query fails."""
    try:
        return int(pltpu.get_tpu_info().vmem_capacity_bytes)
    except Exception:
        return 64 * 1024 * 1024


def _vmem_usage_bytes(tb, h, w, new_h, new_w, itemsize):
    """Estimated in-kernel VMEM use incl. (sublane, 128-lane) padding."""
    sub_in = _sublane(itemsize)
    lane = 128
    x_tile = _round_up(tb * h, sub_in) * _round_up(w, lane) * itemsize
    out_tile = _round_up(new_h, sub_in) * _round_up(tb * new_w, lane) * itemsize
    mats = (_round_up(new_h, 8) * _round_up(h, lane)
            + _round_up(w, 8) * _round_up(new_w, lane)) * 4
    y_scr = _round_up(tb * h, 8) * _round_up(new_w, lane) * 4
    yt_scr = _round_up(h, 8) * _round_up(tb * new_w, lane) * 4
    # inputs/outputs/matrices are double-buffered by the pipeline; scratch is not.
    return 2 * (x_tile + out_tile + mats) + y_scr + yt_scr + (1 << 20)


def _pick_tb(b, h, w, new_h, new_w, itemsize, vmem_budget):
    """Images per grid step: lane-dense output, MXU-friendly M, VMEM-safe,
    sublane-aligned (tb*h % sublane == 0), and >=4 grid steps when b allows."""
    sub_in = _sublane(itemsize)
    step = sub_in // math.gcd(h, sub_in)            # keeps the (tb*h, w) block aligned

    # Desired: lane-dense output slab (tb*new_w >= 256) and decent MXU M (tb*h >= 256).
    tb = max(_round_up(-(-256 // new_w), step),
             _round_up(-(-256 // h), step), step)
    tb = min(tb, _round_up(64, step))               # bound the unrolled relayout loop
    tb = min(tb, _round_up(b, step))                # don't pad far past the batch

    while tb > step and _vmem_usage_bytes(tb, h, w, new_h, new_w, itemsize) > vmem_budget:
        tb -= step

    # Prefer >=4 grid steps (>=2 per v7x TensorCore + pipeline overlap), but never
    # shrink below the lane-density minimum when the batch can afford it.
    steps_tb = _round_up(max(1, -(-b // 4)), step)
    lane_min = min(_round_up(-(-128 // new_w), step), _round_up(b, step))
    tb = min(tb, max(steps_tb, lane_min))
    return max(tb, step)


# --------------------------------- the kernel --------------------------------

def _bilinear_kernel(x_ref, a_ref, bt_ref, o_ref, y_ref, yt_ref):
    # x_ref : (TB*H, W)  input images, batch folded onto rows
    # a_ref : (new_h, H) f32 H-taps      bt_ref: (W, new_w) f32 W-taps
    # o_ref : (1, new_h, TB*new_w)       lane-dense output slab
    # y_ref : (TB*H, new_w) f32 scratch  yt_ref: (H, TB*new_w) f32 scratch
    new_h, h = a_ref.shape
    w, new_w = bt_ref.shape
    tb = x_ref.shape[0] // h

    # bf16 inputs stay bf16 on the MXU (W-taps rounded to bf16, below bf16 output
    # precision); everything else computes in f32.  Accumulation is always f32.
    mxu_dtype = jnp.bfloat16 if x_ref.dtype == jnp.bfloat16 else jnp.float32
    lhs = x_ref[...].astype(mxu_dtype)              # no-op cast for f32 / bf16 inputs
    rhs = bt_ref[...].astype(mxu_dtype)

    # (1) W-contraction: one batch-folded MXU matmul, streamed into VMEM scratch.
    y_ref[...] = jnp.dot(lhs, rhs, preferred_element_type=jnp.float32)

    # (2) Relayout the small f32 intermediate (TB, H, new_w) -> (H, TB*new_w):
    #     the batch moves onto the lane axis via static VMEM slice copies.
    if tb > 1:
        for t in range(tb):
            yt_ref[:, t * new_w:(t + 1) * new_w] = y_ref[t * h:(t + 1) * h, :]
        rhs2 = yt_ref[...]
    else:
        rhs2 = y_ref[...]                           # (H, new_w): already the right layout

    # (3) H-contraction: ONE matmul with lane-dense N = TB*new_w, f32 taps and
    #     f32 accumulation; single lane-dense store of the whole block.
    o_ref[0] = jnp.dot(a_ref[...], rhs2,
                       preferred_element_type=jnp.float32).astype(o_ref.dtype)


# --------------------------------- the wrapper --------------------------------

@functools.partial(jax.jit, static_argnames=("down_factor",))
def downsampling_bilinear2d(x: jnp.ndarray, down_factor: int = 2) -> jnp.ndarray:
    """Equivalent of DownsamplingBilinear2d(down_factor)(x) for NCHW input."""
    n, c, h, w = x.shape
    new_h = h // down_factor
    new_w = w // down_factor
    if new_h <= 0 or new_w <= 0:
        raise ValueError("down_factor too large for the spatial dimensions")
    b = n * c
    itemsize = np.dtype(x.dtype).itemsize

    a_mat = jnp.asarray(_interp_matrix_np(new_h, h))       # (new_h, H) f32
    bt_mat = jnp.asarray(_interp_matrix_np(new_w, w).T)    # (W, new_w) f32

    vmem_cap = _vmem_capacity_bytes()
    # ~48 MiB ceiling on v7x (64 MiB/core), ~96 MiB on v5e/v6e (128 MiB).
    vmem_ceiling = max(min(vmem_cap - (16 << 20), (vmem_cap * 3) // 4), 16 << 20)

    tb = _pick_tb(b, h, w, new_h, new_w, itemsize, vmem_ceiling)
    grid_b = -(-b // tb)
    b_pad = grid_b * tb

    x_flat = x.reshape(b, h, w)
    if b_pad != b:
        x_flat = jnp.pad(x_flat, ((0, b_pad - b), (0, 0), (0, 0)))
    x2d = x_flat.reshape(b_pad * h, w)                      # free reshape in HBM

    est = _vmem_usage_bytes(tb, h, w, new_h, new_w, itemsize)
    vmem_limit = int(max(32 << 20, min(vmem_ceiling, 2 * est)))

    flops = 2 * b_pad * (h * w * new_w + new_h * h * new_w)
    bytes_accessed = (b_pad * (h * w + new_h * new_w)) * itemsize \
        + (new_h * h + w * new_w) * 4

    yt_shape = (h, tb * new_w) if tb > 1 else (8, 128)

    out_slab = pl.pallas_call(
        _bilinear_kernel,
        out_shape=jax.ShapeDtypeStruct((grid_b, new_h, tb * new_w), x.dtype),
        grid_spec=pltpu.PrefetchScalarGridSpec(
            num_scalar_prefetch=0,
            grid=(grid_b,),
            in_specs=[
                pl.BlockSpec((tb * h, w), lambda i: (i, 0)),
                # grid-invariant, tiny tap matrices (default double buffering is fine)
                pl.BlockSpec((new_h, h), lambda i: (0, 0)),
                pl.BlockSpec((w, new_w), lambda i: (0, 0)),
            ],
            out_specs=pl.BlockSpec((1, new_h, tb * new_w), lambda i: (i, 0, 0)),
            scratch_shapes=[
                pltpu.VMEM((tb * h, new_w), jnp.float32),   # W-contracted intermediate
                pltpu.VMEM(yt_shape, jnp.float32),          # lane-dense relayout buffer
            ],
        ),
        compiler_params=pltpu.CompilerParams(
            dimension_semantics=("parallel",),
            vmem_limit_bytes=vmem_limit,
        ),
        cost_estimate=pl.CostEstimate(
            flops=flops, transcendentals=0, bytes_accessed=bytes_accessed),
    )(x2d, a_mat, bt_mat)

    # (grid_b, new_h, tb*new_w) -> (b_pad, new_h, new_w): small output, cheap in XLA.
    out = out_slab.reshape(grid_b, new_h, tb, new_w).transpose(0, 2, 1, 3)
    out = out.reshape(b_pad, new_h, new_w)
    if b_pad != b:
        out = out[:b]
    return out.reshape(n, c, new_h, new_w)


# ----------------------------------- tests ------------------------------------

if __name__ == "__main__":
    key = jax.random.PRNGKey(0)

    # 1) f32, down_factor=2: bilinear (align_corners=False) == exact 2x2 avg pool.
    x = jax.random.normal(key, (2, 4, 16, 16), dtype=jnp.float32)
    out = downsampling_bilinear2d(x, down_factor=2)
    jax.block_until_ready(out)
    assert out.shape == (2, 4, 8, 8), out.shape
    ref = x.reshape(2, 4, 8, 2, 8, 2).mean(axis=(3, 5))
    assert jnp.allclose(out, ref, atol=1e-5, rtol=1e-5)

    # 2) bf16 input + batch not divisible by the block size (padding + bf16 MXU path).
    xb = jax.random.normal(key, (1, 5, 16, 16), dtype=jnp.bfloat16)
    outb = downsampling_bilinear2d(xb, down_factor=2)
    jax.block_until_ready(outb)
    assert outb.shape == (1, 5, 8, 8), outb.shape
    refb = xb.astype(jnp.float32).reshape(1, 5, 8, 2, 8, 2).mean(axis=(3, 5))
    assert jnp.allclose(outb.astype(jnp.float32), refb, atol=5e-2, rtol=5e-2)

    # 3) down_factor=3: non-trivial fractional taps, checked against a host einsum
    #    with the same interpolation matrices.
    x3 = jax.random.normal(key, (2, 3, 16, 16), dtype=jnp.float32)
    out3 = downsampling_bilinear2d(x3, down_factor=3)
    jax.block_until_ready(out3)
    assert out3.shape == (2, 3, 5, 5), out3.shape
    a_np = _interp_matrix_np(5, 16).astype(np.float64)
    bt_np = _interp_matrix_np(5, 16).T.astype(np.float64)
    ref3 = np.einsum("ah,nchw,wv->ncav", a_np,
                     np.asarray(x3, dtype=np.float64), bt_np)
    assert jnp.allclose(out3, jnp.asarray(ref3, dtype=jnp.float32),
                        atol=1e-4, rtol=1e-4)

    print("KERNEL_OK")
</pallas_src>

<mosaic_0001>
module attributes {stable_mosaic.version = 11 : i64} {
  func.func @_bilinear_kernel(%arg0: i32, %arg1: memref<128x16xf32, #tpu.memory_space<vmem>>, %arg2: memref<8x16xf32, #tpu.memory_space<vmem>>, %arg3: memref<16x8xf32, #tpu.memory_space<vmem>>, %arg4: memref<1x8x64xf32, #tpu.memory_space<vmem>>, %arg5: memref<128x8xf32, #tpu.memory_space<vmem>>, %arg6: memref<16x64xf32, #tpu.memory_space<vmem>>) attributes {dimension_semantics = [#tpu.dimension_semantics<parallel>], iteration_bounds = array<i64: 1>, scalar_prefetch = 0 : i64, scratch_operands = 2 : i64, tpu.core_type = #tpu.core_type<tc>, window_params = [{transform_indices = @transform_0, window_bounds = array<i64: 128, 16>}, {pipeline_mode = #tpu.pipeline_mode<synchronous>, transform_indices = @transform_1, window_bounds = array<i64: 8, 16>}, {pipeline_mode = #tpu.pipeline_mode<synchronous>, transform_indices = @transform_2, window_bounds = array<i64: 16, 8>}, {transform_indices = @transform_3, window_bounds = array<i64: 1, 8, 64>}]} {
    %c0 = arith.constant 0 : index
    %c0_0 = arith.constant 0 : index
    %0 = vector.load %arg1[%c0, %c0_0] : memref<128x16xf32, #tpu.memory_space<vmem>>, vector<128x16xf32>
    %c0_1 = arith.constant 0 : index
    %c0_2 = arith.constant 0 : index
    %1 = vector.load %arg3[%c0_1, %c0_2] : memref<16x8xf32, #tpu.memory_space<vmem>>, vector<16x8xf32>
    %cst = arith.constant dense<0.000000e+00> : vector<128x8xf32>
    %2 = tpu.matmul %0, %1, %cst {dimension_numbers = #tpu.dot_dimension_numbers<[1], [0], [0], [1], [0, 0, 1, 1], [], []>} : vector<128x16xf32>, vector<16x8xf32>, vector<128x8xf32> -> vector<128x8xf32>
    %c0_3 = arith.constant 0 : index
    %c0_4 = arith.constant 0 : index
    %3 = vector.load %arg5[%c0_3, %c0_4] : memref<128x8xf32, #tpu.memory_space<vmem>>, vector<128x8xf32>
    tpu.vector_store %arg5[%c0_3, %c0_4], %2 {strides = array<i32>} : memref<128x8xf32, #tpu.memory_space<vmem>>, vector<128x8xf32>,
    %c0_5 = arith.constant 0 : index
    %c0_6 = arith.constant 0 : index
    %4 = vector.load %arg5[%c0_5, %c0_6] : memref<128x8xf32, #tpu.memory_space<vmem>>, vector<16x8xf32>
    %c0_7 = arith.constant 0 : index
    %c0_8 = arith.constant 0 : index
    %5 = vector.load %arg6[%c0_7, %c0_8] : memref<16x64xf32, #tpu.memory_space<vmem>>, vector<16x8xf32>
    tpu.vector_store %arg6[%c0_7, %c0_8], %4 {strides = array<i32>} : memref<16x64xf32, #tpu.memory_space<vmem>>, vector<16x8xf32>,
    %c16 = arith.constant 16 : index
    %c0_9 = arith.constant 0 : index
    %6 = vector.load %arg5[%c16, %c0_9] : memref<128x8xf32, #tpu.memory_space<vmem>>, vector<16x8xf32>
    %c0_10 = arith.constant 0 : index
    %c8 = arith.constant 8 : index
    %7 = vector.load %arg6[%c0_10, %c8] : memref<16x64xf32, #tpu.memory_space<vmem>>, vector<16x8xf32>
    tpu.vector_store %arg6[%c0_10, %c8], %6 {strides = array<i32>} : memref<16x64xf32, #tpu.memory_space<vmem>>, vector<16x8xf32>,
    %c32 = arith.constant 32 : index
    %c0_11 = arith.constant 0 : index
    %8 = vector.load %arg5[%c32, %c0_11] : memref<128x8xf32, #tpu.memory_space<vmem>>, vector<16x8xf32>
    %c0_12 = arith.constant 0 : index
    %c16_13 = arith.constant 16 : index
    %9 = vector.load %arg6[%c0_12, %c16_13] : memref<16x64xf32, #tpu.memory_space<vmem>>, vector<16x8xf32>
    tpu.vector_store %arg6[%c0_12, %c16_13], %8 {strides = array<i32>} : memref<16x64xf32, #tpu.memory_space<vmem>>, vector<16x8xf32>,
    %c48 = arith.constant 48 : index
    %c0_14 = arith.constant 0 : index
    %10 = vector.load %arg5[%c48, %c0_14] : memref<128x8xf32, #tpu.memory_space<vmem>>, vector<16x8xf32>
    %c0_15 = arith.constant 0 : index
    %c24 = arith.constant 24 : index
    %11 = vector.load %arg6[%c0_15, %c24] : memref<16x64xf32, #tpu.memory_space<vmem>>, vector<16x8xf32>
    tpu.vector_store %arg6[%c0_15, %c24], %10 {strides = array<i32>} : memref<16x64xf32, #tpu.memory_space<vmem>>, vector<16x8xf32>,
    %c64 = arith.constant 64 : index
    %c0_16 = arith.constant 0 : index
    %12 = vector.load %arg5[%c64, %c0_16] : memref<128x8xf32, #tpu.memory_space<vmem>>, vector<16x8xf32>
    %c0_17 = arith.constant 0 : index
    %c32_18 = arith.constant 32 : index
    %13 = vector.load %arg6[%c0_17, %c32_18] : memref<16x64xf32, #tpu.memory_space<vmem>>, vector<16x8xf32>
    tpu.vector_store %arg6[%c0_17, %c32_18], %12 {strides = array<i32>} : memref<16x64xf32, #tpu.memory_space<vmem>>, vector<16x8xf32>,
    %c80 = arith.constant 80 : index
    %c0_19 = arith.constant 0 : index
    %14 = vector.load %arg5[%c80, %c0_19] : memref<128x8xf32, #tpu.memory_space<vmem>>, vector<16x8xf32>
    %c0_20 = arith.constant 0 : index
    %c40 = arith.constant 40 : index
    %15 = vector.load %arg6[%c0_20, %c40] : memref<16x64xf32, #tpu.memory_space<vmem>>, vector<16x8xf32>
    tpu.vector_store %arg6[%c0_20, %c40], %14 {strides = array<i32>} : memref<16x64xf32, #tpu.memory_space<vmem>>, vector<16x8xf32>,
    %c96 = arith.constant 96 : index
    %c0_21 = arith.constant 0 : index
    %16 = vector.load %arg5[%c96, %c0_21] : memref<128x8xf32, #tpu.memory_space<vmem>>, vector<16x8xf32>
    %c0_22 = arith.constant 0 : index
    %c48_23 = arith.constant 48 : index
    %17 = vector.load %arg6[%c0_22, %c48_23] : memref<16x64xf32, #tpu.memory_space<vmem>>, vector<16x8xf32>
    tpu.vector_store %arg6[%c0_22, %c48_23], %16 {strides = array<i32>} : memref<16x64xf32, #tpu.memory_space<vmem>>, vector<16x8xf32>,
    %c112 = arith.constant 112 : index
    %c0_24 = arith.constant 0 : index
    %18 = vector.load %arg5[%c112, %c0_24] : memref<128x8xf32, #tpu.memory_space<vmem>>, vector<16x8xf32>
    %c0_25 = arith.constant 0 : index
    %c56 = arith.constant 56 : index
    %19 = vector.load %arg6[%c0_25, %c56] : memref<16x64xf32, #tpu.memory_space<vmem>>, vector<16x8xf32>
    tpu.vector_store %arg6[%c0_25, %c56], %18 {strides = array<i32>} : memref<16x64xf32, #tpu.memory_space<vmem>>, vector<16x8xf32>,
    %c0_26 = arith.constant 0 : index
    %c0_27 = arith.constant 0 : index
    %20 = vector.load %arg6[%c0_26, %c0_27] : memref<16x64xf32, #tpu.memory_space<vmem>>, vector<16x64xf32>
    %c0_28 = arith.constant 0 : index
    %c0_29 = arith.constant 0 : index
    %21 = vector.load %arg2[%c0_28, %c0_29] : memref<8x16xf32, #tpu.memory_space<vmem>>, vector<8x16xf32>
    %cst_30 = arith.constant dense<0.000000e+00> : vector<8x64xf32>
    %22 = tpu.matmul %21, %20, %cst_30 {dimension_numbers = #tpu.dot_dimension_numbers<[1], [0], [0], [1], [0, 0, 1, 1], [], []>} : vector<8x16xf32>, vector<16x64xf32>, vector<8x64xf32> -> vector<8x64xf32>
    %c0_31 = arith.constant 0 : index
    %c0_32 = arith.constant 0 : index
    %c0_33 = arith.constant 0 : index
    %23 = vector.load %arg4[%c0_31, %c0_32, %c0_33] : memref<1x8x64xf32, #tpu.memory_space<vmem>>, vector<1x8x64xf32>
    %24 = vector.shape_cast %23 : vector<1x8x64xf32> to vector<8x64xf32>
    %25 = vector.shape_cast %22 : vector<8x64xf32> to vector<1x8x64xf32>
    tpu.vector_store %arg4[%c0_31, %c0_32, %c0_33], %25 {strides = array<i32>} : memref<1x8x64xf32, #tpu.memory_space<vmem>>, vector<1x8x64xf32>,
    return
  }
  func.func @transform_0(%arg0: i32) -> (i32, i32) {
    %c0_i32 = arith.constant 0 : i32
    %c0_i32_0 = arith.constant 0 : i32
    return %arg0, %c0_i32 : i32, i32
  }
  func.func @transform_1(%arg0: i32) -> (i32, i32) {
    %c0_i32 = arith.constant 0 : i32
    %c0_i32_0 = arith.constant 0 : i32
    %c0_i32_1 = arith.constant 0 : i32
    return %c0_i32, %c0_i32_0 : i32, i32
  }
  func.func @transform_2(%arg0: i32) -> (i32, i32) {
    %c0_i32 = arith.constant 0 : i32
    %c0_i32_0 = arith.constant 0 : i32
    %c0_i32_1 = arith.constant 0 : i32
    return %c0_i32, %c0_i32_0 : i32, i32
  }
  func.func @transform_3(%arg0: i32) -> (i32, i32, i32) {
    %c0_i32 = arith.constant 0 : i32
    %c0_i32_0 = arith.constant 0 : i32
    %c0_i32_1 = arith.constant 0 : i32
    return %arg0, %c0_i32, %c0_i32_0 : i32, i32, i32
  }
}

</mosaic_0001>

<llo_original>
// kernel: downsampling_bilinear2d.1
$region0: #{downsampling_bilinear2d.1}
  #allocation0 [shape = 'u32[]', space=smem, size = 0x4, offset = 0x4, fixed_abs, tag = 'smem constant byte address 0x4 - core index']
  #allocation1 [shape = 'u32[72,128]{1,0:T(1,128)}', space=vmem, size = 0x9000, scoped, tag = 'internal scratch']
  #allocation2 [shape = 'f32[128,8]{1,0:T(8,128)}', space=vmem, size = 0x10000, scoped, tag = 'scratch operand']
  #allocation3 [shape = 'f32[16,64]{1,0:T(8,128)}', space=vmem, size = 0x2000, scoped, tag = 'scratch operand']
  %s0 = inlined_call_operand.hbm [shape: f32[128,16], index: 0, kind: input, shape index: {}]
  %s1 = inlined_call_operand.hbm [shape: f32[8,16], index: 1, kind: input, shape index: {}]
  %s2 = inlined_call_operand.hbm [shape: f32[16,8], index: 2, kind: input, shape index: {}]
  %s3 = inlined_call_operand.vmem [shape: f32[1,8,64], index: 3, kind: output, shape index: {}]
  %s4 = sld [smem:[#allocation0]]
  $region34: #{downsampling_bilinear2d.1} parent=0
    _
  %s6 = ssub.s32 1, %s4
  %s7 = scalar_select 0, %s6, %s4
  $region1: #{downsampling_bilinear2d.1} parent=0
    #allocation4 [shape = 'u8[65536]{0}', space=vmem, size = 0x10000, scoped, tag = 'input window, operand 0, single buffered']
    #allocation5 [shape = 's32[1]{0}', space=sflag, size = 0x4, scoped, tag = 'scoped memory for downsampling_bilinear2d.1']
    #allocation6 [shape = 'u8[4096]{0}', space=vmem, size = 0x1000, scoped, tag = 'input window, operand 1, single buffered']
    #allocation7 [shape = 's32[1]{0}', space=sflag, size = 0x4, scoped, tag = 'scoped memory for downsampling_bilinear2d.1']
    #allocation8 [shape = 'u8[8192]{0}', space=vmem, size = 0x2000, scoped, tag = 'input window, operand 2, single buffered']
    %8 = vsyncpa [#allocation5], 0
    %9 = vsyncpa [#allocation7], 0
    // Predicated region
    $region2: #{downsampling_bilinear2d.1} parent=1 // pred_check
      _
    $region3: #{downsampling_bilinear2d.1} parent=1 // pred_check_branch
      %11 = sbr.rel (0) target = $region5
    $region4: #{downsampling_bilinear2d.1} parent=1 // pred_region
      %13 = vsyncadd [#allocation5], 0
      %s14 = sshll.u32 %s0, 4
      %s15 = int_to_ptr.hbm [resolvable:$true] %s14
      %s16 = sshll.u32 [#allocation4], 4
      %s17 = int_to_ptr.vmem [resolvable:$true] %s16
      %22 = dma.hbm_to_vmem [thread:$0]  %s15, 2048, %s17, [#allocation5], 128, 128, 8
    $region5: #{downsampling_bilinear2d.1} parent=1 // pred_fallthru
      _
    // Predicated region
    $region6: #{downsampling_bilinear2d.1} parent=1 // pred_check
      _
    $region7: #{downsampling_bilinear2d.1} parent=1 // pred_check_branch
      %24 = sbr.rel (0) target = $region9
    $region8: #{downsampling_bilinear2d.1} parent=1 // pred_region
      %26 = vsyncadd [#allocation7], 0
      %s28 = sshll.u32 %s1, 4
      %s29 = int_to_ptr.hbm [resolvable:$true] %s28
      %s30 = sshll.u32 [#allocation6], 4
      %s31 = int_to_ptr.vmem [resolvable:$true] %s30
      %33 = dma.hbm_to_vmem [thread:$0]  %s29, 128, %s31, [#allocation7]
    $region9: #{downsampling_bilinear2d.1} parent=1 // pred_fallthru
      _
    // Predicated region
    $region10: #{downsampling_bilinear2d.1} parent=1 // pred_check
      _
    $region11: #{downsampling_bilinear2d.1} parent=1 // pred_check_branch
      %35 = sbr.rel (0) target = $region13
    $region12: #{downsampling_bilinear2d.1} parent=1 // pred_region
      %37 = vsyncadd [#allocation7], 0
      %s38 = sshll.u32 %s2, 4
      %s39 = int_to_ptr.hbm [resolvable:$true] %s38
      %s40 = sshll.u32 [#allocation8], 4
      %s41 = int_to_ptr.vmem [resolvable:$true] %s40
      %46 = dma.hbm_to_vmem [thread:$0]  %s39, 256, %s41, [#allocation7], 128, 128, 8
    $region13: #{downsampling_bilinear2d.1} parent=1 // pred_fallthru
      _
    // Predicated region
    $region14: #{downsampling_bilinear2d.1} parent=1 // pred_check
      _
    $region15: #{downsampling_bilinear2d.1} parent=1 // pred_check_branch
      %48 = sbr.rel (0) target = $region17
    $region16: #{downsampling_bilinear2d.1} parent=1 // pred_region
      %50 = dma.done [#allocation5], 2048
    $region17: #{downsampling_bilinear2d.1} parent=1 // pred_fallthru
      _
    // Predicated region
    $region18: #{downsampling_bilinear2d.1} parent=1 // pred_check
      _
    $region19: #{downsampling_bilinear2d.1} parent=1 // pred_check_branch
      %52 = sbr.rel (0) target = $region21
    $region20: #{downsampling_bilinear2d.1} parent=1 // pred_region
      %54 = dma.done [#allocation7], 128
    $region21: #{downsampling_bilinear2d.1} parent=1 // pred_fallthru
      _
    // Predicated region
    $region22: #{downsampling_bilinear2d.1} parent=1 // pred_check
      _
    $region23: #{downsampling_bilinear2d.1} parent=1 // pred_check_branch
      %56 = sbr.rel (0) target = $region25
    $region24: #{downsampling_bilinear2d.1} parent=1 // pred_region
      %58 = dma.done [#allocation7], 256
    $region25: #{downsampling_bilinear2d.1} parent=1 // pred_fallthru
      _
    %v59 = vld [vmem:[#allocation4] sm:$0xff]
    %v60 = vld [vmem:[#allocation4 + $0x8] sm:$0xff]
    %v61 = vld [vmem:[#allocation4 + $0x10] sm:$0xff]
    %v62 = vld [vmem:[#allocation4 + $0x18] sm:$0xff]
    %v63 = vld [vmem:[#allocation4 + $0x20] sm:$0xff]
    %v64 = vld [vmem:[#allocation4 + $0x28] sm:$0xff]
    %v65 = vld [vmem:[#allocation4 + $0x30] sm:$0xff]
    %v66 = vld [vmem:[#allocation4 + $0x38] sm:$0xff]
    %v67 = vld [vmem:[#allocation4 + $0x40] sm:$0xff]
    %v68 = vld [vmem:[#allocation4 + $0x48] sm:$0xff]
    %v69 = vld [vmem:[#allocation4 + $0x50] sm:$0xff]
    %v70 = vld [vmem:[#allocation4 + $0x58] sm:$0xff]
    %v71 = vld [vmem:[#allocation4 + $0x60] sm:$0xff]
    %v72 = vld [vmem:[#allocation4 + $0x68] sm:$0xff]
    %v73 = vld [vmem:[#allocation4 + $0x70] sm:$0xff]
    %v74 = vld [vmem:[#allocation4 + $0x78] sm:$0xff]
    %v75 = vld [vmem:[#allocation8] sm:$0xff]
    %v76 = vld [vmem:[#allocation8 + $0x8] sm:$0xff]
    %vm77 = vcmask 130048
    %v79 = vsel %vm77, %v59, 0
    %v82 = vsel %vm77, %v60, 0
    %v85 = vsel %vm77, %v61, 0
    %v88 = vsel %vm77, %v62, 0
    %v91 = vsel %vm77, %v63, 0
    %v94 = vsel %vm77, %v64, 0
    %v97 = vsel %vm77, %v65, 0
    %v100 = vsel %vm77, %v66, 0
    %v103 = vsel %vm77, %v67, 0
    %v106 = vsel %vm77, %v68, 0
    %v109 = vsel %vm77, %v69, 0
    %v112 = vsel %vm77, %v70, 0
    %v115 = vsel %vm77, %v71, 0
    %v118 = vsel %vm77, %v72, 0
    %v121 = vsel %vm77, %v73, 0
    %v124 = vsel %vm77, %v74, 0
    %126 = vmatpush.msra.mxu0 0.0
    %127 = vmatpush.msra.mxu0 0.0
    %128 = vmatpush.msra.mxu0 0.0
    %129 = vmatpush.msra.mxu0 0.0
    %130 = vmatpush.msra.mxu0 0.0
    %131 = vmatpush.msra.mxu0 0.0
    %132 = vmatpush.msra.mxu0 0.0
    %133 = vmatpush.msra.mxu0 0.0
    %134 = vmatpush.msra.mxu0 0.0
    %135 = vmatpush.msra.mxu0 0.0
    %136 = vmatpush.msra.mxu0 0.0
    %137 = vmatpush.msra.mxu0 0.0
    %138 = vmatpush.msra.mxu0 0.0
    %139 = vmatpush.msra.mxu0 0.0
    %140 = vmatpush.msra.mxu0 %v76
    %141 = vmatpush.msra.mxu0 %v75
    %142 = vmatmul.f32.gmra.mxu0 %v79
    %v143 = vpop.f32.mrf.mxu0
    %v144 = vadd.f32 0.0, %v143
    %145 = vmatmul.f32.gmra.mxu0 %v82
    %v146 = vpop.f32.mrf.mxu0
    %v147 = vadd.f32 0.0, %v146
    %148 = vmatmul.f32.gmra.mxu0 %v85
    %v149 = vpop.f32.mrf.mxu0
    %v150 = vadd.f32 0.0, %v149
    %151 = vmatmul.f32.gmra.mxu0 %v88
    %v152 = vpop.f32.mrf.mxu0
    %v153 = vadd.f32 0.0, %v152
    %154 = vmatmul.f32.gmra.mxu0 %v91
    %v155 = vpop.f32.mrf.mxu0
    %v156 = vadd.f32 0.0, %v155
    %157 = vmatmul.f32.gmra.mxu0 %v94
    %v158 = vpop.f32.mrf.mxu0
    %v159 = vadd.f32 0.0, %v158
    %160 = vmatmul.f32.gmra.mxu0 %v97
    %v161 = vpop.f32.mrf.mxu0
    %v162 = vadd.f32 0.0, %v161
    %163 = vmatmul.f32.gmra.mxu0 %v100
    %v164 = vpop.f32.mrf.mxu0
    %v165 = vadd.f32 0.0, %v164
    %166 = vmatmul.f32.gmra.mxu0 %v103
    %v167 = vpop.f32.mrf.mxu0
    %v168 = vadd.f32 0.0, %v167
    %169 = vmatmul.f32.gmra.mxu0 %v106
    %v170 = vpop.f32.mrf.mxu0
    %v171 = vadd.f32 0.0, %v170
    %172 = vmatmul.f32.gmra.mxu0 %v109
    %v173 = vpop.f32.mrf.mxu0
    %v174 = vadd.f32 0.0, %v173
    %175 = vmatmul.f32.gmra.mxu0 %v112
    %v176 = vpop.f32.mrf.mxu0
    %v177 = vadd.f32 0.0, %v176
    %178 = vmatmul.f32.gmra.mxu0 %v115
    %v179 = vpop.f32.mrf.mxu0
    %v180 = vadd.f32 0.0, %v179
    %181 = vmatmul.f32.gmra.mxu0 %v118
    %v182 = vpop.f32.mrf.mxu0
    %v183 = vadd.f32 0.0, %v182
    %184 = vmatmul.f32.gmra.mxu0 %v121
    %v185 = vpop.f32.mrf.mxu0
    %v186 = vadd.f32 0.0, %v185
    %187 = vmatmul.f32.gmra.mxu0 %v124
    %v188 = vpop.f32.mrf.mxu0
    %v189 = vadd.f32 0.0, %v188
    %190 = vdwg.mxu0
    %vm191 = vcmask 64512
    %192 = vst.msk [vmem:[#allocation2] sm:$0xff] %vm191, %v144
    %193 = vst.msk [vmem:[#allocation2 + $0x8] sm:$0xff] %vm191, %v147
    %194 = vst.msk [vmem:[#allocation2 + $0x10] sm:$0xff] %vm191, %v150
    %195 = vst.msk [vmem:[#allocation2 + $0x18] sm:$0xff] %vm191, %v153
    %196 = vst.msk [vmem:[#allocation2 + $0x20] sm:$0xff] %vm191, %v156
    %197 = vst.msk [vmem:[#allocation2 + $0x28] sm:$0xff] %vm191, %v159
    %198 = vst.msk [vmem:[#allocation2 + $0x30] sm:$0xff] %vm191, %v162
    %199 = vst.msk [vmem:[#allocation2 + $0x38] sm:$0xff] %vm191, %v165
    %200 = vst.msk [vmem:[#allocation2 + $0x40] sm:$0xff] %vm191, %v168
    %201 = vst.msk [vmem:[#allocation2 + $0x48] sm:$0xff] %vm191, %v171
    %202 = vst.msk [vmem:[#allocation2 + $0x50] sm:$0xff] %vm191, %v174
    %203 = vst.msk [vmem:[#allocation2 + $0x58] sm:$0xff] %vm191, %v177
    %204 = vst.msk [vmem:[#allocation2 + $0x60] sm:$0xff] %vm191, %v180
    %205 = vst.msk [vmem:[#allocation2 + $0x68] sm:$0xff] %vm191, %v183
    %206 = vst.msk [vmem:[#allocation2 + $0x70] sm:$0xff] %vm191, %v186
    %207 = vst.msk [vmem:[#allocation2 + $0x78] sm:$0xff] %vm191, %v189
    %v208 = vld [vmem:[#allocation2] sm:$0xff]
    %v209 = vld [vmem:[#allocation2 + $0x8] sm:$0xff]
    %210 = vst.msk [vmem:[#allocation3] sm:$0xff] %vm191, %v208
    %211 = vst.msk [vmem:[#allocation3 + $0x8] sm:$0xff] %vm191, %v209
    %v212 = vld [vmem:[#allocation2 + $0x10] sm:$0xff]
    %v213 = vld [vmem:[#allocation2 + $0x18] sm:$0xff]
    %216 = vrot.lane.b32.xlu0 %v212, 8
    %v217 = vpop.permute.xlu0 %216
    %218 = vrot.lane.b32.xlu0 %v213, 8
    %v219 = vpop.permute.xlu0 %218
    %vm222 = vcmask 130112
    %223 = vst.msk [vmem:[#allocation3] sm:$0xff] %vm222, %v217
    %224 = vst.msk [vmem:[#allocation3 + $0x8] sm:$0xff] %vm222, %v219
    %v225 = vld [vmem:[#allocation2 + $0x20] sm:$0xff]
    %v226 = vld [vmem:[#allocation2 + $0x28] sm:$0xff]
    %229 = vrot.lane.b32.xlu0 %v225, 16
    %v230 = vpop.permute.xlu0 %229
    %231 = vrot.lane.b32.xlu0 %v226, 16
    %v232 = vpop.permute.xlu0 %231
    %vm235 = vcmask 195712
    %236 = vst.msk [vmem:[#allocation3] sm:$0xff] %vm235, %v230
    %237 = vst.msk [vmem:[#allocation3 + $0x8] sm:$0xff] %vm235, %v232
    %v238 = vld [vmem:[#allocation2 + $0x30] sm:$0xff]
    %v239 = vld [vmem:[#allocation2 + $0x38] sm:$0xff]
    %242 = vrot.lane.b32.xlu0 %v238, 24
    %v243 = vpop.permute.xlu0 %242
    %244 = vrot.lane.b32.xlu0 %v239, 24
    %v245 = vpop.permute.xlu0 %244
    %vm248 = vcmask 261312
    %249 = vst.msk [vmem:[#allocation3] sm:$0xff] %vm248, %v243
    %250 = vst.msk [vmem:[#allocation3 + $0x8] sm:$0xff] %vm248, %v245
    %v251 = vld [vmem:[#allocation2 + $0x40] sm:$0xff]
    %v252 = vld [vmem:[#allocation2 + $0x48] sm:$0xff]
    %255 = vrot.lane.b32.xlu0 %v251, 32
    %v256 = vpop.permute.xlu0 %255
    %257 = vrot.lane.b32.xlu0 %v252, 32
    %v258 = vpop.permute.xlu0 %257
    %vm261 = vcmask 326912
    %262 = vst.msk [vmem:[#allocation3] sm:$0xff] %vm261, %v256
    %263 = vst.msk [vmem:[#allocation3 + $0x8] sm:$0xff] %vm261, %v258
    %v264 = vld [vmem:[#allocation2 + $0x50] sm:$0xff]
    %v265 = vld [vmem:[#allocation2 + $0x58] sm:$0xff]
    %268 = vrot.lane.b32.xlu0 %v264, 40
    %v269 = vpop.permute.xlu0 %268
    %270 = vrot.lane.b32.xlu0 %v265, 40
    %v271 = vpop.permute.xlu0 %270
    %vm274 = vcmask 392512
    %275 = vst.msk [vmem:[#allocation3] sm:$0xff] %vm274, %v269
    %276 = vst.msk [vmem:[#allocation3 + $0x8] sm:$0xff] %vm274, %v271
    %v277 = vld [vmem:[#allocation2 + $0x60] sm:$0xff]
    %v278 = vld [vmem:[#allocation2 + $0x68] sm:$0xff]
    %281 = vrot.lane.b32.xlu0 %v277, 48
    %v282 = vpop.permute.xlu0 %281
    %283 = vrot.lane.b32.xlu0 %v278, 48
    %v284 = vpop.permute.xlu0 %283
    %vm287 = vcmask 458112
    %288 = vst.msk [vmem:[#allocation3] sm:$0xff] %vm287, %v282
    %289 = vst.msk [vmem:[#allocation3 + $0x8] sm:$0xff] %vm287, %v284
    %v290 = vld [vmem:[#allocation2 + $0x70] sm:$0xff]
    %v291 = vld [vmem:[#allocation2 + $0x78] sm:$0xff]
    %294 = vrot.lane.b32.xlu0 %v290, 56
    %v295 = vpop.permute.xlu0 %294
    %296 = vrot.lane.b32.xlu0 %v291, 56
    %v297 = vpop.permute.xlu0 %296
    %vm300 = vcmask 523712
    %301 = vst.msk [vmem:[#allocation3] sm:$0xff] %vm300, %v295
    %302 = vst.msk [vmem:[#allocation3 + $0x8] sm:$0xff] %vm300, %v297
    %v303 = vld [vmem:[#allocation3] sm:$0xff]
    %v304 = vld [vmem:[#allocation3 + $0x8] sm:$0xff]
    %v305 = vld [vmem:[#allocation6] sm:$0xff]
    %v307 = vsel %vm77, %v305, 0
    %309 = vmatpush.msra.mxu0 0.0
    %310 = vmatpush.msra.mxu0 0.0
    %311 = vmatpush.msra.mxu0 0.0
    %312 = vmatpush.msra.mxu0 0.0
    %313 = vmatpush.msra.mxu0 0.0
    %314 = vmatpush.msra.mxu0 0.0
    %315 = vmatpush.msra.mxu0 0.0
    %316 = vmatpush.msra.mxu0 0.0
    %317 = vmatpush.msra.mxu0 0.0
    %318 = vmatpush.msra.mxu0 0.0
    %319 = vmatpush.msra.mxu0 0.0
    %320 = vmatpush.msra.mxu0 0.0
    %321 = vmatpush.msra.mxu0 0.0
    %322 = vmatpush.msra.mxu0 0.0
    %323 = vmatpush.msra.mxu0 %v304
    %324 = vmatpush.msra.mxu0 %v303
    %325 = vmatmul.f32.gmra.mxu0 %v307
    %v326 = vpop.f32.mrf.mxu0
    %v327 = vadd.f32 0.0, %v326
    %328 = vdwg.mxu0
    %vm329 = vcmask 523264
    %330 = vst.msk [vmem:[%s3] sm:$0xff] %vm329, %v327
    // Predicated region
    $region26: #{downsampling_bilinear2d.1} parent=1 // pred_check
      _
    $region27: #{downsampling_bilinear2d.1} parent=1 // pred_check_branch
      %332 = sbr.rel (0) target = $region29
    $region28: #{downsampling_bilinear2d.1} parent=1 // pred_region
      _
    $region29: #{downsampling_bilinear2d.1} parent=1 // pred_fallthru
      _
    // Predicated region
    $region30: #{downsampling_bilinear2d.1} parent=1 // pred_check
      _
    $region31: #{downsampling_bilinear2d.1} parent=1 // pred_check_branch
      %334 = sbr.rel (0) target = $region33
    $region32: #{downsampling_bilinear2d.1} parent=1 // pred_region
      _
    $region33: #{downsampling_bilinear2d.1} parent=1 // pred_fallthru
      _
    %335 = vsyncpa [#allocation5], 1
    %336 = vsyncpa [#allocation7], 1

</llo_original>
